<compile_context>
chip_gen: v7x
topology: tpu7x:2x2x1
jax: 0.10.0
libtpu: 0.0.40
codegen_flags: <defaults>
</compile_context>

<pallas_src>
import jax
import jax.numpy as jnp
from jax.experimental import pallas as pl
from jax.experimental.pallas import tpu as pltpu

LANE = 128


def _round_up(x, m):
    return ((x + m - 1) // m) * m


def _pad2d(x, rows, cols):
    r, c = x.shape
    if r == rows and c == cols:
        return x
    return jnp.pad(x, ((0, rows - r), (0, cols - c)))


def _qnet_kernel(obs_ref, ids_ref,
                 w1o_ref, w1i_ref, b1_ref,
                 w2_ref, b2_ref,
                 w3_ref, b3_ref,
                 q_ref):
    # Layer 1: split matmul == concat([obs, ids], -1) @ W1, without the lane
    # relayout a concat would force.
    h1 = (jnp.dot(obs_ref[...], w1o_ref[...], preferred_element_type=jnp.float32)
          + jnp.dot(ids_ref[...], w1i_ref[...], preferred_element_type=jnp.float32)
          + b1_ref[...])
    h1 = jnp.maximum(h1, 0.0)

    # Layer 2: Linear + ReLU
    h2 = jnp.dot(h1, w2_ref[...], preferred_element_type=jnp.float32) + b2_ref[...]
    h2 = jnp.maximum(h2, 0.0)

    # Output layer: Linear (no activation); lane-dense (padded-to-128) store.
    q_ref[...] = jnp.dot(h2, w3_ref[...], preferred_element_type=jnp.float32) + b3_ref[...]


def basic_qnetwork_forward(observation, agent_ids, params, *, row_tile=1024):
    """Mirrors BasicQnetwork.forward.

    observation: [B, N, state_dim] float32
    agent_ids:   [B, N, N]         float32 (one-hot agent ids)
    params: dict with w1,b1,w2,b2,w3,b3   (w1 has shape (state_dim + N, h1))
    Returns (outputs_dict, argmax_action [B, N] int32, evalQ [B, N, A] float32)
    """
    B, N, S = observation.shape
    H1 = params["w1"].shape[1]
    H2 = params["w2"].shape[1]
    A = params["w3"].shape[1]
    M = B * N

    # ---- lane-pad feature dims to 128 (exact: zero padding) ----
    H1p = _round_up(H1, LANE)
    H2p = _round_up(H2, LANE)
    Ap = _round_up(A, LANE)

    f32 = jnp.float32
    w1 = params["w1"].astype(f32)
    w1o = _pad2d(w1[:S, :], S, H1p)              # obs -> h1
    w1i = _pad2d(w1[S:, :], N, H1p)              # agent_ids -> h1
    b1p = _pad2d(params["b1"].astype(f32), 1, H1p)
    w2p = _pad2d(params["w2"].astype(f32), H1p, H2p)
    b2p = _pad2d(params["b2"].astype(f32), 1, H2p)
    w3p = _pad2d(params["w3"].astype(f32), H2p, Ap)
    b3p = _pad2d(params["b3"].astype(f32), 1, Ap)

    # ---- row tiling: pad M up so the grid divides cleanly ----
    TM = min(row_tile, _round_up(M, 8))
    TM = _round_up(TM, 8)
    Mp = _round_up(M, TM)

    obs2d = _pad2d(observation.reshape(M, S).astype(f32), Mp, S)
    ids2d = _pad2d(agent_ids.reshape(M, N).astype(f32), Mp, N)

    grid = (Mp // TM,)

    row_spec = lambda cols: pl.BlockSpec((TM, cols), lambda i: (i, 0))
    const_spec = lambda r, c: pl.BlockSpec((r, c), lambda i: (0, 0))  # weights stay resident

    q2d = pl.pallas_call(
        _qnet_kernel,
        out_shape=jax.ShapeDtypeStruct((Mp, Ap), f32),
        grid=grid,
        in_specs=[
            row_spec(S),                 # obs tile
            row_spec(N),                 # agent_ids tile
            const_spec(S, H1p),          # w1 (obs part)
            const_spec(N, H1p),          # w1 (ids part)
            const_spec(1, H1p),          # b1
            const_spec(H1p, H2p),        # w2
            const_spec(1, H2p),          # b2
            const_spec(H2p, Ap),         # w3
            const_spec(1, Ap),           # b3
        ],
        out_specs=pl.BlockSpec((TM, Ap), lambda i: (i, 0)),
        compiler_params=pltpu.CompilerParams(
            dimension_semantics=("parallel",)),
    )(obs2d, ids2d, w1o, w1i, b1p, w2p, b2p, w3p, b3p)

    evalQ = q2d[:M, :A].reshape(B, N, A)
    # torch.argmax first-occurrence tie-break == jnp.argmax first-occurrence.
    argmax_action = jnp.argmax(evalQ, axis=-1).astype(jnp.int32)
    outputs = {"state": observation}     # Basic_Identical representation
    return outputs, argmax_action, evalQ


def init_params(key, in_dim, hidden_sizes, action_dim):
    """Deterministic synthetic init (shapes match BasicQhead's nn.Linear layers)."""
    k1, k2, k3 = jax.random.split(key, 3)
    h1, h2 = hidden_sizes
    scale = 0.1
    return {
        "w1": scale * jax.random.normal(k1, (in_dim, h1), jnp.float32),
        "b1": jnp.zeros((1, h1), jnp.float32),
        "w2": scale * jax.random.normal(k2, (h1, h2), jnp.float32),
        "b2": jnp.zeros((1, h2), jnp.float32),
        "w3": scale * jax.random.normal(k3, (h2, action_dim), jnp.float32),
        "b3": jnp.zeros((1, action_dim), jnp.float32),
    }


def _reference(observation, agent_ids, params):
    B, N, S = observation.shape
    x = jnp.concatenate([observation, agent_ids], axis=-1).reshape(B * N, S + N)
    h = jnp.maximum(x @ params["w1"] + params["b1"], 0.0)
    h = jnp.maximum(h @ params["w2"] + params["b2"], 0.0)
    q = (h @ params["w3"] + params["b3"]).reshape(B, N, -1)
    return q


if __name__ == "__main__":
    key = jax.random.PRNGKey(0)
    k_obs, k_par = jax.random.split(key)

    # Small shapes consistent with the module's forward.
    B = 2            # batch
    N = 4            # n_agents
    S = 16           # state_dim (representation output)
    A = 8            # action_dim
    hidden_sizes = (32, 32)

    observation = jax.random.normal(k_obs, (B, N, S), jnp.float32)
    agent_ids = jnp.tile(jnp.eye(N, dtype=jnp.float32)[None], (B, 1, 1))  # one-hot ids
    params = init_params(k_par, S + N, hidden_sizes, A)

    # --- primary run (single tile) ---
    outputs, argmax_action, evalQ = basic_qnetwork_forward(observation, agent_ids, params)
    jax.block_until_ready((argmax_action, evalQ))

    q_ref = _reference(observation, agent_ids, params)
    assert jnp.allclose(q_ref, evalQ, atol=1e-5), "Q mismatch"
    assert jnp.array_equal(jnp.argmax(q_ref, axis=-1).astype(jnp.int32), argmax_action), "argmax mismatch"
    assert outputs["state"].shape == observation.shape

    # --- secondary run: exercise multi-tile grid + row padding path ---
    B2 = 37                                   # M = 148 (not a multiple of the tile)
    obs2 = jax.random.normal(jax.random.PRNGKey(1), (B2, N, S), jnp.float32)
    ids2 = jnp.tile(jnp.eye(N, dtype=jnp.float32)[None], (B2, 1, 1))
    _, arg2, q2 = basic_qnetwork_forward(obs2, ids2, params, row_tile=64)
    jax.block_until_ready((arg2, q2))
    q2_ref = _reference(obs2, ids2, params)
    assert jnp.allclose(q2_ref, q2, atol=1e-5), "Q mismatch (tiled)"
    assert jnp.array_equal(jnp.argmax(q2_ref, axis=-1).astype(jnp.int32), arg2), "argmax mismatch (tiled)"

    print("KERNEL_OK")
</pallas_src>

<mosaic_0001>
module attributes {stable_mosaic.version = 11 : i64} {
  func.func @_qnet_kernel(%arg0: i32, %arg1: memref<8x16xf32, #tpu.memory_space<vmem>>, %arg2: memref<8x4xf32, #tpu.memory_space<vmem>>, %arg3: memref<16x128xf32, #tpu.memory_space<vmem>>, %arg4: memref<4x128xf32, #tpu.memory_space<vmem>>, %arg5: memref<1x128xf32, #tpu.memory_space<vmem>>, %arg6: memref<128x128xf32, #tpu.memory_space<vmem>>, %arg7: memref<1x128xf32, #tpu.memory_space<vmem>>, %arg8: memref<128x128xf32, #tpu.memory_space<vmem>>, %arg9: memref<1x128xf32, #tpu.memory_space<vmem>>, %arg10: memref<8x128xf32, #tpu.memory_space<vmem>>) attributes {dimension_semantics = [#tpu.dimension_semantics<parallel>], iteration_bounds = array<i64: 1>, scalar_prefetch = 0 : i64, scratch_operands = 0 : i64, tpu.core_type = #tpu.core_type<tc>, window_params = [{transform_indices = @transform_0, window_bounds = array<i64: 8, 16>}, {transform_indices = @transform_1, window_bounds = array<i64: 8, 4>}, {pipeline_mode = #tpu.pipeline_mode<synchronous>, transform_indices = @transform_2, window_bounds = array<i64: 16, 128>}, {pipeline_mode = #tpu.pipeline_mode<synchronous>, transform_indices = @transform_3, window_bounds = array<i64: 4, 128>}, {pipeline_mode = #tpu.pipeline_mode<synchronous>, transform_indices = @transform_4, window_bounds = array<i64: 1, 128>}, {pipeline_mode = #tpu.pipeline_mode<synchronous>, transform_indices = @transform_5, window_bounds = array<i64: 128, 128>}, {pipeline_mode = #tpu.pipeline_mode<synchronous>, transform_indices = @transform_6, window_bounds = array<i64: 1, 128>}, {pipeline_mode = #tpu.pipeline_mode<synchronous>, transform_indices = @transform_7, window_bounds = array<i64: 128, 128>}, {pipeline_mode = #tpu.pipeline_mode<synchronous>, transform_indices = @transform_8, window_bounds = array<i64: 1, 128>}, {transform_indices = @transform_9, window_bounds = array<i64: 8, 128>}]} {
    %c0 = arith.constant 0 : index
    %c0_0 = arith.constant 0 : index
    %0 = vector.load %arg1[%c0, %c0_0] : memref<8x16xf32, #tpu.memory_space<vmem>>, vector<8x16xf32>
    %c0_1 = arith.constant 0 : index
    %c0_2 = arith.constant 0 : index
    %1 = vector.load %arg3[%c0_1, %c0_2] : memref<16x128xf32, #tpu.memory_space<vmem>>, vector<16x128xf32>
    %cst = arith.constant dense<0.000000e+00> : vector<8x128xf32>
    %2 = tpu.matmul %0, %1, %cst {dimension_numbers = #tpu.dot_dimension_numbers<[1], [0], [0], [1], [0, 0, 1, 1], [], []>} : vector<8x16xf32>, vector<16x128xf32>, vector<8x128xf32> -> vector<8x128xf32>
    %c0_3 = arith.constant 0 : index
    %c0_4 = arith.constant 0 : index
    %3 = vector.load %arg2[%c0_3, %c0_4] : memref<8x4xf32, #tpu.memory_space<vmem>>, vector<8x4xf32>
    %c0_5 = arith.constant 0 : index
    %c0_6 = arith.constant 0 : index
    %4 = vector.load %arg4[%c0_5, %c0_6] : memref<4x128xf32, #tpu.memory_space<vmem>>, vector<4x128xf32>
    %cst_7 = arith.constant dense<0.000000e+00> : vector<8x128xf32>
    %5 = tpu.matmul %3, %4, %cst_7 {dimension_numbers = #tpu.dot_dimension_numbers<[1], [0], [0], [1], [0, 0, 1, 1], [], []>} : vector<8x4xf32>, vector<4x128xf32>, vector<8x128xf32> -> vector<8x128xf32>
    %6 = arith.addf %2, %5 : vector<8x128xf32>
    %c0_8 = arith.constant 0 : index
    %c0_9 = arith.constant 0 : index
    %7 = vector.load %arg5[%c0_8, %c0_9] : memref<1x128xf32, #tpu.memory_space<vmem>>, vector<1x128xf32>
    %8 = vector.broadcast %7 : vector<1x128xf32> to vector<8x128xf32>
    %9 = arith.addf %6, %8 : vector<8x128xf32>
    %cst_10 = arith.constant 0.000000e+00 : f32
    %10 = vector.broadcast %cst_10 : f32 to vector<8x128xf32>
    %11 = arith.maximumf %9, %10 : vector<8x128xf32>
    %c0_11 = arith.constant 0 : index
    %c0_12 = arith.constant 0 : index
    %12 = vector.load %arg6[%c0_11, %c0_12] : memref<128x128xf32, #tpu.memory_space<vmem>>, vector<128x128xf32>
    %cst_13 = arith.constant dense<0.000000e+00> : vector<8x128xf32>
    %13 = tpu.matmul %11, %12, %cst_13 {dimension_numbers = #tpu.dot_dimension_numbers<[1], [0], [0], [1], [0, 0, 1, 1], [], []>} : vector<8x128xf32>, vector<128x128xf32>, vector<8x128xf32> -> vector<8x128xf32>
    %c0_14 = arith.constant 0 : index
    %c0_15 = arith.constant 0 : index
    %14 = vector.load %arg7[%c0_14, %c0_15] : memref<1x128xf32, #tpu.memory_space<vmem>>, vector<1x128xf32>
    %15 = vector.broadcast %14 : vector<1x128xf32> to vector<8x128xf32>
    %16 = arith.addf %13, %15 : vector<8x128xf32>
    %cst_16 = arith.constant 0.000000e+00 : f32
    %17 = vector.broadcast %cst_16 : f32 to vector<8x128xf32>
    %18 = arith.maximumf %16, %17 : vector<8x128xf32>
    %c0_17 = arith.constant 0 : index
    %c0_18 = arith.constant 0 : index
    %19 = vector.load %arg8[%c0_17, %c0_18] : memref<128x128xf32, #tpu.memory_space<vmem>>, vector<128x128xf32>
    %cst_19 = arith.constant dense<0.000000e+00> : vector<8x128xf32>
    %20 = tpu.matmul %18, %19, %cst_19 {dimension_numbers = #tpu.dot_dimension_numbers<[1], [0], [0], [1], [0, 0, 1, 1], [], []>} : vector<8x128xf32>, vector<128x128xf32>, vector<8x128xf32> -> vector<8x128xf32>
    %c0_20 = arith.constant 0 : index
    %c0_21 = arith.constant 0 : index
    %21 = vector.load %arg9[%c0_20, %c0_21] : memref<1x128xf32, #tpu.memory_space<vmem>>, vector<1x128xf32>
    %22 = vector.broadcast %21 : vector<1x128xf32> to vector<8x128xf32>
    %23 = arith.addf %20, %22 : vector<8x128xf32>
    %c0_22 = arith.constant 0 : index
    %c0_23 = arith.constant 0 : index
    %24 = vector.load %arg10[%c0_22, %c0_23] : memref<8x128xf32, #tpu.memory_space<vmem>>, vector<8x128xf32>
    tpu.vector_store %arg10[%c0_22, %c0_23], %23 {strides = array<i32>} : memref<8x128xf32, #tpu.memory_space<vmem>>, vector<8x128xf32>,
    return
  }
  func.func @transform_0(%arg0: i32) -> (i32, i32) {
    %c0_i32 = arith.constant 0 : i32
    %c0_i32_0 = arith.constant 0 : i32
    return %arg0, %c0_i32 : i32, i32
  }
  func.func @transform_1(%arg0: i32) -> (i32, i32) {
    %c0_i32 = arith.constant 0 : i32
    %c0_i32_0 = arith.constant 0 : i32
    return %arg0, %c0_i32 : i32, i32
  }
  func.func @transform_2(%arg0: i32) -> (i32, i32) {
    %c0_i32 = arith.constant 0 : i32
    %c0_i32_0 = arith.constant 0 : i32
    %c0_i32_1 = arith.constant 0 : i32
    return %c0_i32, %c0_i32_0 : i32, i32
  }
  func.func @transform_3(%arg0: i32) -> (i32, i32) {
    %c0_i32 = arith.constant 0 : i32
    %c0_i32_0 = arith.constant 0 : i32
    %c0_i32_1 = arith.constant 0 : i32
    return %c0_i32, %c0_i32_0 : i32, i32
  }
  func.func @transform_4(%arg0: i32) -> (i32, i32) {
    %c0_i32 = arith.constant 0 : i32
    %c0_i32_0 = arith.constant 0 : i32
    %c0_i32_1 = arith.constant 0 : i32
    return %c0_i32, %c0_i32_0 : i32, i32
  }
  func.func @transform_5(%arg0: i32) -> (i32, i32) {
    %c0_i32 = arith.constant 0 : i32
    %c0_i32_0 = arith.constant 0 : i32
    %c0_i32_1 = arith.constant 0 : i32
    return %c0_i32, %c0_i32_0 : i32, i32
  }
  func.func @transform_6(%arg0: i32) -> (i32, i32) {
    %c0_i32 = arith.constant 0 : i32
    %c0_i32_0 = arith.constant 0 : i32
    %c0_i32_1 = arith.constant 0 : i32
    return %c0_i32, %c0_i32_0 : i32, i32
  }
  func.func @transform_7(%arg0: i32) -> (i32, i32) {
    %c0_i32 = arith.constant 0 : i32
    %c0_i32_0 = arith.constant 0 : i32
    %c0_i32_1 = arith.constant 0 : i32
    return %c0_i32, %c0_i32_0 : i32, i32
  }
  func.func @transform_8(%arg0: i32) -> (i32, i32) {
    %c0_i32 = arith.constant 0 : i32
    %c0_i32_0 = arith.constant 0 : i32
    %c0_i32_1 = arith.constant 0 : i32
    return %c0_i32, %c0_i32_0 : i32, i32
  }
  func.func @transform_9(%arg0: i32) -> (i32, i32) {
    %c0_i32 = arith.constant 0 : i32
    %c0_i32_0 = arith.constant 0 : i32
    return %arg0, %c0_i32 : i32, i32
  }
}

</mosaic_0001>

<llo_original>
// kernel: tpu_custom_call.1
$region0: #{tpu_custom_call.1}
  #allocation0 [shape = 'u32[]', space=smem, size = 0x4, offset = 0x4, fixed_abs, tag = 'smem constant byte address 0x4 - core index']
  #allocation1 [shape = 'u32[144,128]{1,0:T(1,128)}', space=vmem, size = 0x12000, scoped, tag = 'internal scratch']
  %s0 = inlined_call_operand.hbm [shape: f32[8,16], index: 0, kind: input, shape index: {}]
  %s1 = inlined_call_operand.vmem [shape: f32[8,4], index: 1, kind: input, shape index: {}]
  %s2 = inlined_call_operand.vmem [shape: f32[16,128], index: 2, kind: input, shape index: {}]
  %s3 = inlined_call_operand.vmem [shape: f32[4,128], index: 3, kind: input, shape index: {}]
  %s4 = inlined_call_operand.vmem [shape: f32[1,128], index: 4, kind: input, shape index: {}]
  %s5 = inlined_call_operand.hbm [shape: f32[128,128], index: 5, kind: input, shape index: {}]
  %s6 = inlined_call_operand.vmem [shape: f32[1,128], index: 6, kind: input, shape index: {}]
  %s7 = inlined_call_operand.hbm [shape: f32[128,128], index: 7, kind: input, shape index: {}]
  %s8 = inlined_call_operand.vmem [shape: f32[1,128], index: 8, kind: input, shape index: {}]
  %s9 = inlined_call_operand.hbm [shape: f32[8,128], index: 9, kind: output, shape index: {}]
  %s10 = sld [smem:[#allocation0]]
  $region58: #{tpu_custom_call.1} parent=0
    _
  %s12 = ssub.s32 1, %s10
  %s13 = scalar_select 0, %s12, %s10
  $region1: #{tpu_custom_call.1} parent=0
    #allocation2 [shape = 'u8[4096]{0}', space=vmem, size = 0x1000, scoped, tag = 'input window, operand 0, single buffered']
    #allocation3 [shape = 's32[1]{0}', space=sflag, size = 0x4, scoped, tag = 'scoped memory for tpu_custom_call.1']
    #allocation4 [shape = 's32[1]{0}', space=sflag, size = 0x4, scoped, tag = 'scoped memory for tpu_custom_call.1']
    #allocation5 [shape = 'u8[65536]{0}', space=vmem, size = 0x10000, scoped, tag = 'input window, operand 5, single buffered']
    #allocation6 [shape = 's32[1]{0}', space=sflag, size = 0x4, scoped, tag = 'scoped memory for tpu_custom_call.1']
    #allocation7 [shape = 'u8[65536]{0}', space=vmem, size = 0x10000, scoped, tag = 'input window, operand 7, single buffered']
    #allocation8 [shape = 'u8[4096]{0}', space=vmem, size = 0x1000, scoped, tag = 'output window, operand 0, single buffered']
    %14 = vsyncpa [#allocation3], 0
    %15 = vsyncpa [#allocation6], 0
    %16 = vsyncpa [#allocation4], 0
    // Predicated region
    $region2: #{tpu_custom_call.1} parent=1 // pred_check
      _
    $region3: #{tpu_custom_call.1} parent=1 // pred_check_branch
      %18 = sbr.rel (0) target = $region5
    $region4: #{tpu_custom_call.1} parent=1 // pred_region
      %s20 = ssub.s32 128, 128
      %21 = vsyncadd [#allocation3], %s20
      %s23 = sshll.u32 [#allocation2], 4
      %s24 = int_to_ptr.vmem [resolvable:$true] %s23
      %26 = dma.hbm_to_vmem [thread:$0]  %s0, 128, %s24, [#allocation3]
    $region5: #{tpu_custom_call.1} parent=1 // pred_fallthru
      _
    // Predicated region
    $region6: #{tpu_custom_call.1} parent=1 // pred_check
      _
    $region7: #{tpu_custom_call.1} parent=1 // pred_check_branch
      %28 = sbr.rel (0) target = $region9
    $region8: #{tpu_custom_call.1} parent=1 // pred_region
      _
    $region9: #{tpu_custom_call.1} parent=1 // pred_fallthru
      _
    // Predicated region
    $region10: #{tpu_custom_call.1} parent=1 // pred_check
      _
    $region11: #{tpu_custom_call.1} parent=1 // pred_check_branch
      %30 = sbr.rel (0) target = $region13
    $region12: #{tpu_custom_call.1} parent=1 // pred_region
      _
    $region13: #{tpu_custom_call.1} parent=1 // pred_fallthru
      _
    // Predicated region
    $region14: #{tpu_custom_call.1} parent=1 // pred_check
      _
    $region15: #{tpu_custom_call.1} parent=1 // pred_check_branch
      %32 = sbr.rel (0) target = $region17
    $region16: #{tpu_custom_call.1} parent=1 // pred_region
      _
    $region17: #{tpu_custom_call.1} parent=1 // pred_fallthru
      _
    // Predicated region
    $region18: #{tpu_custom_call.1} parent=1 // pred_check
      _
    $region19: #{tpu_custom_call.1} parent=1 // pred_check_branch
      %34 = sbr.rel (0) target = $region21
    $region20: #{tpu_custom_call.1} parent=1 // pred_region
      _
    $region21: #{tpu_custom_call.1} parent=1 // pred_fallthru
      _
    // Predicated region
    $region22: #{tpu_custom_call.1} parent=1 // pred_check
      _
    $region23: #{tpu_custom_call.1} parent=1 // pred_check_branch
      %36 = sbr.rel (0) target = $region25
    $region24: #{tpu_custom_call.1} parent=1 // pred_region
      %s38 = ssub.s32 2048, 2048
      %39 = vsyncadd [#allocation6], %s38
      %s40 = sshll.u32 [#allocation5], 4
      %s41 = int_to_ptr.vmem [resolvable:$true] %s40
      %46 = dma.hbm_to_vmem [thread:$0]  %s5, 2048, %s41, [#allocation6], 128, 128, 8
    $region25: #{tpu_custom_call.1} parent=1 // pred_fallthru
      _
    // Predicated region
    $region26: #{tpu_custom_call.1} parent=1 // pred_check
      _
    $region27: #{tpu_custom_call.1} parent=1 // pred_check_branch
      %48 = sbr.rel (0) target = $region29
    $region28: #{tpu_custom_call.1} parent=1 // pred_region
      _
    $region29: #{tpu_custom_call.1} parent=1 // pred_fallthru
      _
    // Predicated region
    $region30: #{tpu_custom_call.1} parent=1 // pred_check
      _
    $region31: #{tpu_custom_call.1} parent=1 // pred_check_branch
      %50 = sbr.rel (0) target = $region33
    $region32: #{tpu_custom_call.1} parent=1 // pred_region
      %s52 = ssub.s32 2048, 2048
      %53 = vsyncadd [#allocation6], %s52
      %s54 = sshll.u32 [#allocation7], 4
      %s55 = int_to_ptr.vmem [resolvable:$true] %s54
      %60 = dma.hbm_to_vmem [thread:$0]  %s7, 2048, %s55, [#allocation6], 128, 128, 8
    $region33: #{tpu_custom_call.1} parent=1 // pred_fallthru
      _
    // Predicated region
    $region34: #{tpu_custom_call.1} parent=1 // pred_check
      _
    $region35: #{tpu_custom_call.1} parent=1 // pred_check_branch
      %62 = sbr.rel (0) target = $region37
    $region36: #{tpu_custom_call.1} parent=1 // pred_region
      _
    $region37: #{tpu_custom_call.1} parent=1 // pred_fallthru
      _
    // Predicated region
    $region38: #{tpu_custom_call.1} parent=1 // pred_check
      _
    $region39: #{tpu_custom_call.1} parent=1 // pred_check_branch
      %64 = sbr.rel (0) target = $region41
    $region40: #{tpu_custom_call.1} parent=1 // pred_region
      %65 = dma.done [#allocation3], 128
    $region41: #{tpu_custom_call.1} parent=1 // pred_fallthru
      _
    // Predicated region
    $region42: #{tpu_custom_call.1} parent=1 // pred_check
      _
    $region43: #{tpu_custom_call.1} parent=1 // pred_check_branch
      %67 = sbr.rel (0) target = $region45
    $region44: #{tpu_custom_call.1} parent=1 // pred_region
      %68 = dma.done [#allocation6], 2048
    $region45: #{tpu_custom_call.1} parent=1 // pred_fallthru
      _
    // Predicated region
    $region46: #{tpu_custom_call.1} parent=1 // pred_check
      _
    $region47: #{tpu_custom_call.1} parent=1 // pred_check_branch
      %70 = sbr.rel (0) target = $region49
    $region48: #{tpu_custom_call.1} parent=1 // pred_region
      %71 = dma.done [#allocation6], 2048
    $region49: #{tpu_custom_call.1} parent=1 // pred_fallthru
      _
    %v72 = vld [vmem:[#allocation2] sm:$0xff]
    %v73 = vld [vmem:[%s2] sm:$0xff]
    %v74 = vld [vmem:[%s2 + $0x8] sm:$0xff]
    %v75 = vld [vmem:[%s1] sm:$0xff]
    %v76 = vld [vmem:[%s3] sm:$0xf]
    %vm77 = vcmask 31744
    %v79 = vsel %vm77, %v75, 0
    %vm81 = vcmask 1043456
    %v83 = vsel %vm81, %v76, 0
    %85 = vmatprep.subr.mxu0 0.0
    %86 = vmatpush1.msra.mxu0 %v83
    %87 = vmatprep.subr.mxu0 0.0
    %88 = vmatpush1.msra.mxu0 0.0
    %89 = vmatprep.subr.mxu0 0.0
    %90 = vmatpush1.msra.mxu0 0.0
    %91 = vmatprep.subr.mxu0 0.0
    %92 = vmatpush1.msra.mxu0 0.0
    %93 = vmatprep.subr.mxu0 0.0
    %94 = vmatpush1.msra.mxu0 0.0
    %95 = vmatprep.subr.mxu0 0.0
    %96 = vmatpush1.msra.mxu0 0.0
    %97 = vmatprep.subr.mxu0 0.0
    %98 = vmatpush1.msra.mxu0 0.0
    %99 = vmatprep.subr.mxu0 0.0
    %100 = vmatpush1.msra.mxu0 0.0
    %101 = vmatprep.subr.mxu0 0.0
    %102 = vmatpush1.msra.mxu0 0.0
    %103 = vmatprep.subr.mxu0 0.0
    %104 = vmatpush1.msra.mxu0 0.0
    %105 = vmatprep.subr.mxu0 0.0
    %106 = vmatpush1.msra.mxu0 0.0
    %107 = vmatprep.subr.mxu0 0.0
    %108 = vmatpush1.msra.mxu0 0.0
    %109 = vmatprep.subr.mxu0 0.0
    %110 = vmatpush1.msra.mxu0 0.0
    %111 = vmatprep.subr.mxu0 0.0
    %112 = vmatpush1.msra.mxu0 0.0
    %113 = vmatprep.subr.mxu0 0.0
    %114 = vmatpush1.msra.mxu0 0.0
    %115 = vmatprep.subr.mxu0 0.0
    %116 = vmatpush1.msra.mxu0 0.0
    %117 = vmatprep.subr.mxu0 0.0
    %118 = vmatpush1.msra.mxu0 0.0
    %119 = vmatprep.subr.mxu0 0.0
    %120 = vmatpush1.msra.mxu0 0.0
    %121 = vmatprep.subr.mxu0 0.0
    %122 = vmatpush1.msra.mxu0 0.0
    %123 = vmatprep.subr.mxu0 0.0
    %124 = vmatpush1.msra.mxu0 0.0
    %125 = vmatprep.subr.mxu0 0.0
    %126 = vmatpush1.msra.mxu0 0.0
    %127 = vmatprep.subr.mxu0 0.0
    %128 = vmatpush1.msra.mxu0 0.0
    %129 = vmatprep.subr.mxu0 0.0
    %130 = vmatpush1.msra.mxu0 0.0
    %131 = vmatprep.subr.mxu0 0.0
    %132 = vmatpush1.msra.mxu0 0.0
    %133 = vmatprep.subr.mxu0 0.0
    %134 = vmatpush1.msra.mxu0 0.0
    %135 = vmatprep.subr.mxu0 0.0
    %136 = vmatpush1.msra.mxu0 0.0
    %137 = vmatprep.subr.mxu0 0.0
    %138 = vmatpush1.msra.mxu0 0.0
    %139 = vmatprep.subr.mxu0 0.0
    %140 = vmatpush1.msra.mxu0 0.0
    %141 = vmatprep.subr.mxu0 0.0
    %142 = vmatpush1.msra.mxu0 0.0
    %143 = vmatprep.subr.mxu0 0.0
    %144 = vmatpush1.msra.mxu0 0.0
    %145 = vmatprep.subr.mxu0 0.0
    %146 = vmatpush1.msra.mxu0 0.0
    %147 = vmatprep.subr.mxu0 0.0
    %148 = vmatpush1.msra.mxu0 0.0
    %149 = vmatprep.mubr.f32.mxu0 0.0
    %150 = vmatmul.mubr.f32.gmra.mrb[0].mxu0 %v79
    %v151 = vpop.f32.mrb[0].mxu0
    %v152 = vadd.f32 0.0, %v151
    %v153 = vpop.f32.mrb[0].mxu0
    %154 = vdwg.mxu0
    %vm155 = vcmask 130048
    %v157 = vsel %vm155, %v72, 0
    %159 = vmatprep.subr.mxu0 0.0
    %160 = vmatpush1.msra.mxu0 %v73
    %161 = vmatprep.subr.mxu0 0.0
    %162 = vmatpush1.msra.mxu0 %v74
    %163 = vmatprep.subr.mxu0 0.0
    %164 = vmatpush1.msra.mxu0 0.0
    %165 = vmatprep.subr.mxu0 0.0
    %166 = vmatpush1.msra.mxu0 0.0
    %167 = vmatprep.subr.mxu0 0.0
    %168 = vmatpush1.msra.mxu0 0.0
    %169 = vmatprep.subr.mxu0 0.0
    %170 = vmatpush1.msra.mxu0 0.0
    %171 = vmatprep.subr.mxu0 0.0
    %172 = vmatpush1.msra.mxu0 0.0
    %173 = vmatprep.subr.mxu0 0.0
    %174 = vmatpush1.msra.mxu0 0.0
    %175 = vmatprep.subr.mxu0 0.0
    %176 = vmatpush1.msra.mxu0 0.0
    %177 = vmatprep.subr.mxu0 0.0
    %178 = vmatpush1.msra.mxu0 0.0
    %179 = vmatprep.subr.mxu0 0.0
    %180 = vmatpush1.msra.mxu0 0.0
    %181 = vmatprep.subr.mxu0 0.0
    %182 = vmatpush1.msra.mxu0 0.0
    %183 = vmatprep.subr.mxu0 0.0
    %184 = vmatpush1.msra.mxu0 0.0
    %185 = vmatprep.subr.mxu0 0.0
    %186 = vmatpush1.msra.mxu0 0.0
    %187 = vmatprep.subr.mxu0 0.0
    %188 = vmatpush1.msra.mxu0 0.0
    %189 = vmatprep.subr.mxu0 0.0
    %190 = vmatpush1.msra.mxu0 0.0
    %191 = vmatprep.subr.mxu0 0.0
    %192 = vmatpush1.msra.mxu0 0.0
    %193 = vmatprep.subr.mxu0 0.0
    %194 = vmatpush1.msra.mxu0 0.0
    %195 = vmatprep.subr.mxu0 0.0
    %196 = vmatpush1.msra.mxu0 0.0
    %197 = vmatprep.subr.mxu0 0.0
    %198 = vmatpush1.msra.mxu0 0.0
    %199 = vmatprep.subr.mxu0 0.0
    %200 = vmatpush1.msra.mxu0 0.0
    %201 = vmatprep.subr.mxu0 0.0
    %202 = vmatpush1.msra.mxu0 0.0
    %203 = vmatprep.subr.mxu0 0.0
    %204 = vmatpush1.msra.mxu0 0.0
    %205 = vmatprep.subr.mxu0 0.0
    %206 = vmatpush1.msra.mxu0 0.0
    %207 = vmatprep.subr.mxu0 0.0
    %208 = vmatpush1.msra.mxu0 0.0
    %209 = vmatprep.subr.mxu0 0.0
    %210 = vmatpush1.msra.mxu0 0.0
    %211 = vmatprep.subr.mxu0 0.0
    %212 = vmatpush1.msra.mxu0 0.0
    %213 = vmatprep.subr.mxu0 0.0
    %214 = vmatpush1.msra.mxu0 0.0
    %215 = vmatprep.subr.mxu0 0.0
    %216 = vmatpush1.msra.mxu0 0.0
    %217 = vmatprep.subr.mxu0 0.0
    %218 = vmatpush1.msra.mxu0 0.0
    %219 = vmatprep.subr.mxu0 0.0
    %220 = vmatpush1.msra.mxu0 0.0
    %221 = vmatprep.subr.mxu0 0.0
    %222 = vmatpush1.msra.mxu0 0.0
    %223 = vmatprep.mubr.f32.mxu0 0.0
    %224 = vmatmul.mubr.f32.gmra.mrb[0].mxu0 %v157
    %v225 = vpop.f32.mrb[0].mxu0
    %v226 = vadd.f32 %v152, %v225
    %v227 = vpop.f32.mrb[0].mxu0
    %228 = vdwg.mxu0
    %v229 = vld [vmem:[%s4] sm:$0x1]
    %v231 = vlaneseq
    %v232 = vshrl.u32 %v231, 7
    %v233 = vsub.s32 0, %v232
    %v234 = vrot.slane %v229, %v233
    %v236 = vadd.f32 %v226, %v234
    %v237 = vmax.f32 %v236, 0.0
    %v238 = vld [vmem:[#allocation5] sm:$0xff]
    %v239 = vld [vmem:[#allocation5 + $0x8] sm:$0xff]
    %v240 = vld [vmem:[#allocation5 + $0x10] sm:$0xff]
    %v241 = vld [vmem:[#allocation5 + $0x18] sm:$0xff]
    %v242 = vld [vmem:[#allocation5 + $0x20] sm:$0xff]
    %v243 = vld [vmem:[#allocation5 + $0x28] sm:$0xff]
    %v244 = vld [vmem:[#allocation5 + $0x30] sm:$0xff]
    %v245 = vld [vmem:[#allocation5 + $0x38] sm:$0xff]
    %v246 = vld [vmem:[#allocation5 + $0x40] sm:$0xff]
    %v247 = vld [vmem:[#allocation5 + $0x48] sm:$0xff]
    %v248 = vld [vmem:[#allocation5 + $0x50] sm:$0xff]
    %v249 = vld [vmem:[#allocation5 + $0x58] sm:$0xff]
    %v250 = vld [vmem:[#allocation5 + $0x60] sm:$0xff]
    %v251 = vld [vmem:[#allocation5 + $0x68] sm:$0xff]
    %v252 = vld [vmem:[#allocation5 + $0x70] sm:$0xff]
    %v253 = vld [vmem:[#allocation5 + $0x78] sm:$0xff]
    %v254 = vld [vmem:[%s6] sm:$0x1]
    %v256 = vlaneseq
    %v257 = vshrl.u32 %v256, 7
    %v258 = vsub.s32 0, %v257
    %v259 = vrot.slane %v254, %v258
    %261 = vmatprep.subr.mxu0 0.0
    %262 = vmatpush1.msra.mxu0 %v238
    %263 = vmatprep.subr.mxu0 0.0
    %264 = vmatpush1.msra.mxu0 %v239
    %265 = vmatprep.subr.mxu0 0.0
    %266 = vmatpush1.msra.mxu0 %v240
    %267 = vmatprep.subr.mxu0 0.0
    %268 = vmatpush1.msra.mxu0 %v241
    %269 = vmatprep.subr.mxu0 0.0
    %270 = vmatpush1.msra.mxu0 %v242
    %271 = vmatprep.subr.mxu0 0.0
    %272 = vmatpush1.msra.mxu0 %v243
    %273 = vmatprep.subr.mxu0 0.0
    %274 = vmatpush1.msra.mxu0 %v244
    %275 = vmatprep.subr.mxu0 0.0
    %276 = vmatpush1.msra.mxu0 %v245
    %277 = vmatprep.subr.mxu0 0.0
    %278 = vmatpush1.msra.mxu0 %v246
    %279 = vmatprep.subr.mxu0 0.0
    %280 = vmatpush1.msra.mxu0 %v247
    %281 = vmatprep.subr.mxu0 0.0
    %282 = vmatpush1.msra.mxu0 %v248
    %283 = vmatprep.subr.mxu0 0.0
    %284 = vmatpush1.msra.mxu0 %v249
    %285 = vmatprep.subr.mxu0 0.0
    %286 = vmatpush1.msra.mxu0 %v250
    %287 = vmatprep.subr.mxu0 0.0
    %288 = vmatpush1.msra.mxu0 %v251
    %289 = vmatprep.subr.mxu0 0.0
    %290 = vmatpush1.msra.mxu0 %v252
    %291 = vmatprep.subr.mxu0 0.0
    %292 = vmatpush1.msra.mxu0 %v253
    %293 = vmatprep.subr.mxu0 0.0
    %294 = vmatpush1.msra.mxu0 0.0
    %295 = vmatprep.subr.mxu0 0.0
    %296 = vmatpush1.msra.mxu0 0.0
    %297 = vmatprep.subr.mxu0 0.0
    %298 = vmatpush1.msra.mxu0 0.0
    %299 = vmatprep.subr.mxu0 0.0
    %300 = vmatpush1.msra.mxu0 0.0
    %301 = vmatprep.subr.mxu0 0.0
    %302 = vmatpush1.msra.mxu0 0.0
    %303 = vmatprep.subr.mxu0 0.0
    %304 = vmatpush1.msra.mxu0 0.0
    %305 = vmatprep.subr.mxu0 0.0
    %306 = vmatpush1.msra.mxu0 0.0
    %307 = vmatprep.subr.mxu0 0.0
    %308 = vmatpush1.msra.mxu0 0.0
    %309 = vmatprep.subr.mxu0 0.0
    %310 = vmatpush1.msra.mxu0 0.0
    %311 = vmatprep.subr.mxu0 0.0
    %312 = vmatpush1.msra.mxu0 0.0
    %313 = vmatprep.subr.mxu0 0.0
    %314 = vmatpush1.msra.mxu0 0.0
    %315 = vmatprep.subr.mxu0 0.0
    %316 = vmatpush1.msra.mxu0 0.0
    %317 = vmatprep.subr.mxu0 0.0
    %318 = vmatpush1.msra.mxu0 0.0
    %319 = vmatprep.subr.mxu0 0.0
    %320 = vmatpush1.msra.mxu0 0.0
    %321 = vmatprep.subr.mxu0 0.0
    %322 = vmatpush1.msra.mxu0 0.0
    %323 = vmatprep.subr.mxu0 0.0
    %324 = vmatpush1.msra.mxu0 0.0
    %325 = vmatprep.mubr.f32.mxu0 0.0
    %326 = vmatmul.mubr.f32.gmra.mrb[0].mxu0 %v237
    %v327 = vpop.f32.mrb[0].mxu0
    %v328 = vadd.f32 %v259, %v327
    %v329 = vpop.f32.mrb[0].mxu0
    %330 = vdwg.mxu0
    %v331 = vmax.f32 %v328, 0.0
    %v332 = vld [vmem:[#allocation7] sm:$0xff]
    %v333 = vld [vmem:[#allocation7 + $0x8] sm:$0xff]
    %v334 = vld [vmem:[#allocation7 + $0x10] sm:$0xff]
    %v335 = vld [vmem:[#allocation7 + $0x18] sm:$0xff]
    %v336 = vld [vmem:[#allocation7 + $0x20] sm:$0xff]
    %v337 = vld [vmem:[#allocation7 + $0x28] sm:$0xff]
    %v338 = vld [vmem:[#allocation7 + $0x30] sm:$0xff]
    %v339 = vld [vmem:[#allocation7 + $0x38] sm:$0xff]
    %v340 = vld [vmem:[#allocation7 + $0x40] sm:$0xff]
    %v341 = vld [vmem:[#allocation7 + $0x48] sm:$0xff]
    %v342 = vld [vmem:[#allocation7 + $0x50] sm:$0xff]
    %v343 = vld [vmem:[#allocation7 + $0x58] sm:$0xff]
    %v344 = vld [vmem:[#allocation7 + $0x60] sm:$0xff]
    %v345 = vld [vmem:[#allocation7 + $0x68] sm:$0xff]
    %v346 = vld [vmem:[#allocation7 + $0x70] sm:$0xff]
    %v347 = vld [vmem:[#allocation7 + $0x78] sm:$0xff]
    %v348 = vld [vmem:[%s8] sm:$0x1]
    %v350 = vlaneseq
    %v351 = vshrl.u32 %v350, 7
    %v352 = vsub.s32 0, %v351
    %v353 = vrot.slane %v348, %v352
    %355 = vmatprep.subr.mxu0 0.0
    %356 = vmatpush1.msra.mxu0 %v332
    %357 = vmatprep.subr.mxu0 0.0
    %358 = vmatpush1.msra.mxu0 %v333
    %359 = vmatprep.subr.mxu0 0.0
    %360 = vmatpush1.msra.mxu0 %v334
    %361 = vmatprep.subr.mxu0 0.0
    %362 = vmatpush1.msra.mxu0 %v335
    %363 = vmatprep.subr.mxu0 0.0
    %364 = vmatpush1.msra.mxu0 %v336
    %365 = vmatprep.subr.mxu0 0.0
    %366 = vmatpush1.msra.mxu0 %v337
    %367 = vmatprep.subr.mxu0 0.0
    %368 = vmatpush1.msra.mxu0 %v338
    %369 = vmatprep.subr.mxu0 0.0
    %370 = vmatpush1.msra.mxu0 %v339
    %371 = vmatprep.subr.mxu0 0.0
    %372 = vmatpush1.msra.mxu0 %v340
    %373 = vmatprep.subr.mxu0 0.0
    %374 = vmatpush1.msra.mxu0 %v341
    %375 = vmatprep.subr.mxu0 0.0
    %376 = vmatpush1.msra.mxu0 %v342
    %377 = vmatprep.subr.mxu0 0.0
    %378 = vmatpush1.msra.mxu0 %v343
    %379 = vmatprep.subr.mxu0 0.0
    %380 = vmatpush1.msra.mxu0 %v344
    %381 = vmatprep.subr.mxu0 0.0
    %382 = vmatpush1.msra.mxu0 %v345
    %383 = vmatprep.subr.mxu0 0.0
    %384 = vmatpush1.msra.mxu0 %v346
    %385 = vmatprep.subr.mxu0 0.0
    %386 = vmatpush1.msra.mxu0 %v347
    %387 = vmatprep.subr.mxu0 0.0
    %388 = vmatpush1.msra.mxu0 0.0
    %389 = vmatprep.subr.mxu0 0.0
    %390 = vmatpush1.msra.mxu0 0.0
    %391 = vmatprep.subr.mxu0 0.0
    %392 = vmatpush1.msra.mxu0 0.0
    %393 = vmatprep.subr.mxu0 0.0
    %394 = vmatpush1.msra.mxu0 0.0
    %395 = vmatprep.subr.mxu0 0.0
    %396 = vmatpush1.msra.mxu0 0.0
    %397 = vmatprep.subr.mxu0 0.0
    %398 = vmatpush1.msra.mxu0 0.0
    %399 = vmatprep.subr.mxu0 0.0
    %400 = vmatpush1.msra.mxu0 0.0
    %401 = vmatprep.subr.mxu0 0.0
    %402 = vmatpush1.msra.mxu0 0.0
    %403 = vmatprep.subr.mxu0 0.0
    %404 = vmatpush1.msra.mxu0 0.0
    %405 = vmatprep.subr.mxu0 0.0
    %406 = vmatpush1.msra.mxu0 0.0
    %407 = vmatprep.subr.mxu0 0.0
    %408 = vmatpush1.msra.mxu0 0.0
    %409 = vmatprep.subr.mxu0 0.0
    %410 = vmatpush1.msra.mxu0 0.0
    %411 = vmatprep.subr.mxu0 0.0
    %412 = vmatpush1.msra.mxu0 0.0
    %413 = vmatprep.subr.mxu0 0.0
    %414 = vmatpush1.msra.mxu0 0.0
    %415 = vmatprep.subr.mxu0 0.0
    %416 = vmatpush1.msra.mxu0 0.0
    %417 = vmatprep.subr.mxu0 0.0
    %418 = vmatpush1.msra.mxu0 0.0
    %419 = vmatprep.mubr.f32.mxu0 0.0
    %420 = vmatmul.mubr.f32.gmra.mrb[0].mxu0 %v331
    %v421 = vpop.f32.mrb[0].mxu0
    %v422 = vadd.f32 %v353, %v421
    %v423 = vpop.f32.mrb[0].mxu0
    %424 = vdwg.mxu0
    %425 = vst [vmem:[#allocation8] sm:$0xff] %v422
    // Predicated region
    $region50: #{tpu_custom_call.1} parent=1 // pred_check
      _
    $region51: #{tpu_custom_call.1} parent=1 // pred_check_branch
      %427 = sbr.rel (0) target = $region53
    $region52: #{tpu_custom_call.1} parent=1 // pred_region
      %s429 = ssub.s32 128, 128
      %430 = vsyncadd [#allocation4], %s429
      %s432 = sshll.u32 [#allocation8], 4
      %s433 = int_to_ptr.vmem [resolvable:$true] %s432
      %435 = dma.vmem_to_hbm [thread:$0]  %s433, 128, %s9, [#allocation4]
    $region53: #{tpu_custom_call.1} parent=1 // pred_fallthru
      _
    // Predicated region
    $region54: #{tpu_custom_call.1} parent=1 // pred_check
      _
    $region55: #{tpu_custom_call.1} parent=1 // pred_check_branch
      %437 = sbr.rel (0) target = $region57
    $region56: #{tpu_custom_call.1} parent=1 // pred_region
      %438 = dma.done [#allocation4], 128
    $region57: #{tpu_custom_call.1} parent=1 // pred_fallthru
      _
    %439 = vsyncpa [#allocation3], 1
    %440 = vsyncpa [#allocation6], 1
    %441 = vsyncpa [#allocation4], 1

</llo_original>
